<compile_context>
chip_gen: v6e
topology: v6e:2x2x1
jax: 0.10.0
libtpu: 0.0.40
codegen_flags: <defaults>
</compile_context>

<pallas_src>
import jax
import jax.numpy as jnp
import numpy as np
from jax.experimental import pallas as pl
from jax.experimental.pallas import tpu as pltpu

LN10 = 2.30259  # constant used by the original module (not exactly ln(10))


def _after_diffusion_kernel(x_ref, d_ref, m_ref, o_ref):
    # x_ref / o_ref: (bB, M, tT) tile (batch-block x mel bins x time);
    #                time is the lane axis, mel bins the sublane axis.
    # d_ref / m_ref: (1, M, 1) per-mel-bin affine params (LN10 already folded),
    #                broadcast across the batch-block and time lanes.
    x = x_ref[...].astype(jnp.float32)
    o_ref[...] = (x * d_ref[...] + m_ref[...]).astype(o_ref.dtype)


def _choose_tiling(B, M, T, itemsize, max_tile_t, target_tile_bytes):
    """Pick (bB, tT, nb, nt) so each grid step moves ~target_tile_bytes and the
    parallel grid has >= 2 steps whenever the data allows (v7x dual-TC)."""
    # dtype-aware sublane padding: f32 packs 8 rows/vreg, bf16 16, int8/fp8 32.
    sub = max(8, 32 // max(1, itemsize))
    m_pad = -(-M // sub) * sub

    # Cap tT so a single (1, M, tT) tile never exceeds the byte target
    # (keeps big-M configs inside v7x's 64 MiB VMEM after double buffering).
    t_budget = max(128, (target_tile_bytes // (m_pad * itemsize)) // 128 * 128)
    cap = min(T, max_tile_t, t_budget)

    # Balanced, lane-dense time tiles.
    nt = pl.cdiv(T, cap)
    tT = min(T, 128 * pl.cdiv(pl.cdiv(T, nt), 128))
    nt = pl.cdiv(T, tT)

    # Batch blocking toward the byte target.
    t_pad = -(-tT // 128) * 128
    tile1_bytes = m_pad * t_pad * itemsize
    bB = max(1, min(B, target_tile_bytes // max(1, tile1_bytes)))
    nb = pl.cdiv(B, bB)

    # Guarantee >= 2 grid steps for v7x's two TensorCores when possible.
    if nb * nt < 2:
        if B >= 2:
            bB = max(1, B // 2)
            nb = pl.cdiv(B, bB)
        elif T >= 256:
            tT = 128 * pl.cdiv(pl.cdiv(T, 2), 128)
            nt = pl.cdiv(T, tT)

    return bB, tT, nb, nt, m_pad


def after_diffusion(x, spec_max, spec_min, *, max_tile_t=8192,
                    target_tile_bytes=4 << 20):
    """x: (B, 1, M, T); spec_max/spec_min: per-mel-bin (M,) (or broadcastable).
    Returns (B, M, T)."""
    B, C, M, T = x.shape
    assert C == 1, "AfterDiffusion expects a singleton channel dim"

    spec_max = jnp.broadcast_to(
        jnp.asarray(spec_max, jnp.float32).reshape(-1), (M,)).reshape(1, M, 1)
    spec_min = jnp.broadcast_to(
        jnp.asarray(spec_min, jnp.float32).reshape(-1), (M,)).reshape(1, M, 1)
    # Fold the LN10 multiply into the tiny per-mel params (O(M) work, not O(B*M*T)).
    d = (spec_max - spec_min) * (0.5 * LN10)   # (1, M, 1) f32
    m = (spec_max + spec_min) * (0.5 * LN10)   # (1, M, 1) f32

    itemsize = jnp.dtype(x.dtype).itemsize
    bB, tT, nb, nt, m_pad = _choose_tiling(
        B, M, T, itemsize, max_tile_t, target_tile_bytes)
    grid = (nb, nt)

    # VMEM ceiling from the actual tiles: 2x double-buffered (in + out) slabs
    # + resident d/m columns + slack. Stays well under v7x's 64 MiB physical
    # budget with the default 4 MiB target (4 * 4 MiB + ~2 MiB).
    t_pad = -(-tT // 128) * 128
    io_tile_bytes = bB * m_pad * t_pad * itemsize
    dm_bytes = 2 * m_pad * 128 * 4
    vmem_limit = int(min(100 << 20,
                         max(4 << 20, 4 * io_tile_bytes + dm_bytes + (2 << 20))))

    cost = pl.CostEstimate(
        flops=2 * B * M * T,
        transcendentals=0,
        bytes_accessed=2 * B * M * T * itemsize + 2 * M * 4,
    )

    return pl.pallas_call(
        _after_diffusion_kernel,
        out_shape=jax.ShapeDtypeStruct((B, M, T), x.dtype),
        grid=grid,
        in_specs=[
            # x read directly from its (B, 1, M, T) layout; the channel dim is
            # squeezed away so the kernel sees a (bB, M, tT) tile.
            pl.BlockSpec((bB, None, M, tT), lambda b, t: (b, 0, 0, t)),
            pl.BlockSpec((1, M, 1), lambda b, t: (0, 0, 0)),
            pl.BlockSpec((1, M, 1), lambda b, t: (0, 0, 0)),
        ],
        out_specs=pl.BlockSpec((bB, M, tT), lambda b, t: (b, 0, t)),
        compiler_params=pltpu.CompilerParams(
            dimension_semantics=("parallel", "parallel"),
            vmem_limit_bytes=vmem_limit,
        ),
        cost_estimate=cost,
    )(x, d, m)


def _reference(x, spec_max, spec_min):
    """Pure-JAX reference mirroring the PyTorch forward exactly."""
    xs = jnp.squeeze(x, axis=1)                 # squeeze(1)      -> (B, M, T)
    xp = jnp.transpose(xs, (0, 2, 1))           # permute(0,2,1)  -> (B, T, M)
    d = (spec_max - spec_min) / 2
    m = (spec_max + spec_min) / 2
    ref = (xp * d + m) * LN10
    return jnp.transpose(ref, (0, 2, 1))        # transpose(2,1)  -> (B, M, T)


if __name__ == "__main__":
    key = jax.random.PRNGKey(0)
    k1, k2, k3 = jax.random.split(key, 3)

    # Case 1: tiny shape (T < 128, batch splits so the grid still has 2 steps).
    B, M, T = 2, 16, 32
    x1 = jax.random.normal(k1, (B, 1, M, T), dtype=jnp.float32)
    spec_max1 = jnp.linspace(0.5, 2.0, M, dtype=jnp.float32)
    spec_min1 = jnp.linspace(-6.0, -4.0, M, dtype=jnp.float32)
    out1 = jax.block_until_ready(after_diffusion(x1, spec_max1, spec_min1))
    np.testing.assert_allclose(
        np.asarray(out1), np.asarray(_reference(x1, spec_max1, spec_min1)),
        rtol=1e-5, atol=1e-5)

    # Case 2: lane-dense tiled path with a partial last time block and batch
    # blocking bB=2 (T=320, forced tile_t=128 -> 3 balanced time tiles).
    B2, M2, T2 = 2, 24, 320
    x2 = jax.random.normal(k2, (B2, 1, M2, T2), dtype=jnp.float32)
    spec_max2 = jnp.linspace(1.0, 3.0, M2, dtype=jnp.float32)
    spec_min2 = jnp.linspace(-8.0, -5.0, M2, dtype=jnp.float32)
    out2 = jax.block_until_ready(
        after_diffusion(x2, spec_max2, spec_min2, max_tile_t=128))
    np.testing.assert_allclose(
        np.asarray(out2), np.asarray(_reference(x2, spec_max2, spec_min2)),
        rtol=1e-5, atol=1e-5)

    # Case 3: B=1 long-T path exercises the "at least 2 time tiles" split
    # (balanced tiles, no near-empty trailing block).
    B3, M3, T3 = 1, 40, 1280
    x3 = jax.random.normal(k3, (B3, 1, M3, T3), dtype=jnp.bfloat16)
    spec_max3 = jnp.linspace(0.25, 2.5, M3, dtype=jnp.float32)
    spec_min3 = jnp.linspace(-7.0, -3.0, M3, dtype=jnp.float32)
    out3 = jax.block_until_ready(
        after_diffusion(x3, spec_max3, spec_min3, target_tile_bytes=64 << 10))
    np.testing.assert_allclose(
        np.asarray(out3, dtype=np.float32),
        np.asarray(_reference(x3.astype(jnp.float32), spec_max3, spec_min3)),
        rtol=2e-2, atol=2e-2)

    print("KERNEL_OK")
</pallas_src>

<mosaic_0001>
module attributes {stable_mosaic.version = 11 : i64} {
  func.func @_after_diffusion_kernel(%arg0: i32, %arg1: i32, %arg2: memref<1x1x16x32xf32, #tpu.memory_space<vmem>>, %arg3: memref<1x16x1xf32, #tpu.memory_space<vmem>>, %arg4: memref<1x16x1xf32, #tpu.memory_space<vmem>>, %arg5: memref<1x16x32xf32, #tpu.memory_space<vmem>>) attributes {dimension_semantics = [#tpu.dimension_semantics<parallel>, #tpu.dimension_semantics<parallel>], iteration_bounds = array<i64: 2, 1>, scalar_prefetch = 0 : i64, scratch_operands = 0 : i64, tpu.core_type = #tpu.core_type<tc>, window_params = [{transform_indices = @transform_0, window_bounds = array<i64: 1, 1, 16, 32>}, {pipeline_mode = #tpu.pipeline_mode<synchronous>, transform_indices = @transform_1, window_bounds = array<i64: 1, 16, 1>}, {pipeline_mode = #tpu.pipeline_mode<synchronous>, transform_indices = @transform_2, window_bounds = array<i64: 1, 16, 1>}, {transform_indices = @transform_3, window_bounds = array<i64: 1, 16, 32>}]} {
    %c0 = arith.constant 0 : index
    %c0_0 = arith.constant 0 : index
    %c0_1 = arith.constant 0 : index
    %c0_2 = arith.constant 0 : index
    %0 = vector.load %arg2[%c0, %c0_0, %c0_1, %c0_2] : memref<1x1x16x32xf32, #tpu.memory_space<vmem>>, vector<1x1x16x32xf32>
    %1 = vector.shape_cast %0 : vector<1x1x16x32xf32> to vector<1x16x32xf32>
    %c0_3 = arith.constant 0 : index
    %c0_4 = arith.constant 0 : index
    %c0_5 = arith.constant 0 : index
    %2 = vector.load %arg3[%c0_3, %c0_4, %c0_5] : memref<1x16x1xf32, #tpu.memory_space<vmem>>, vector<1x16x1xf32>
    %3 = vector.broadcast %2 : vector<1x16x1xf32> to vector<1x16x32xf32>
    %4 = arith.mulf %1, %3 : vector<1x16x32xf32>
    %c0_6 = arith.constant 0 : index
    %c0_7 = arith.constant 0 : index
    %c0_8 = arith.constant 0 : index
    %5 = vector.load %arg4[%c0_6, %c0_7, %c0_8] : memref<1x16x1xf32, #tpu.memory_space<vmem>>, vector<1x16x1xf32>
    %6 = vector.broadcast %5 : vector<1x16x1xf32> to vector<1x16x32xf32>
    %7 = arith.addf %4, %6 : vector<1x16x32xf32>
    %c0_9 = arith.constant 0 : index
    %c0_10 = arith.constant 0 : index
    %c0_11 = arith.constant 0 : index
    %8 = vector.load %arg5[%c0_9, %c0_10, %c0_11] : memref<1x16x32xf32, #tpu.memory_space<vmem>>, vector<1x16x32xf32>
    tpu.vector_store %arg5[%c0_9, %c0_10, %c0_11], %7 {strides = array<i32>} : memref<1x16x32xf32, #tpu.memory_space<vmem>>, vector<1x16x32xf32>,
    return
  }
  func.func @transform_0(%arg0: i32, %arg1: i32) -> (i32, i32, i32, i32) {
    %c0_i32 = arith.constant 0 : i32
    %c0_i32_0 = arith.constant 0 : i32
    %c0_i32_1 = arith.constant 0 : i32
    return %arg0, %c0_i32, %c0_i32_0, %arg1 : i32, i32, i32, i32
  }
  func.func @transform_1(%arg0: i32, %arg1: i32) -> (i32, i32, i32) {
    %c0_i32 = arith.constant 0 : i32
    %c0_i32_0 = arith.constant 0 : i32
    %c0_i32_1 = arith.constant 0 : i32
    %c0_i32_2 = arith.constant 0 : i32
    return %c0_i32, %c0_i32_0, %c0_i32_1 : i32, i32, i32
  }
  func.func @transform_2(%arg0: i32, %arg1: i32) -> (i32, i32, i32) {
    %c0_i32 = arith.constant 0 : i32
    %c0_i32_0 = arith.constant 0 : i32
    %c0_i32_1 = arith.constant 0 : i32
    %c0_i32_2 = arith.constant 0 : i32
    return %c0_i32, %c0_i32_0, %c0_i32_1 : i32, i32, i32
  }
  func.func @transform_3(%arg0: i32, %arg1: i32) -> (i32, i32, i32) {
    %c0_i32 = arith.constant 0 : i32
    %c0_i32_0 = arith.constant 0 : i32
    return %arg0, %c0_i32, %arg1 : i32, i32, i32
  }
}

</mosaic_0001>

<llo_original>
// kernel: tpu_custom_call.1
$region0: #{tpu_custom_call.1}
  #allocation0 [shape = 'u32[]', space=smem, size = 0x4, offset = 0x4, fixed_abs, tag = 'smem constant byte address 0x4 - core index']
  #allocation1 [shape = 'u32[144,128]{1,0:T(1,128)}', space=vmem, size = 0x12000, scoped, tag = 'internal scratch']
  %s0 = inlined_call_operand.vmem [shape: f32[2,1,16,32], index: 0, kind: input, shape index: {}]
  %s1 = inlined_call_operand.vmem [shape: f32[1,16,1], index: 1, kind: input, shape index: {}]
  %s2 = inlined_call_operand.vmem [shape: f32[1,16,1], index: 2, kind: input, shape index: {}]
  %s3 = inlined_call_operand.hbm [shape: f32[2,16,32], index: 3, kind: output, shape index: {}]
  %s4 = sld [smem:[#allocation0]]
  $region45: #{tpu_custom_call.1} parent=0
    _
  %s6 = ssub.s32 1, %s4
  %s7 = scalar_select 0, %s6, %s4
  $region1: #{tpu_custom_call.1} parent=0
    #allocation2 [shape = 'u8[16384]{0}', space=vmem, size = 0x4000, scoped, tag = 'output window, operand 0']
    #allocation3 [shape = 's32[2]{0}', space=sflag, size = 0x8, scoped, tag = 'scoped memory for tpu_custom_call.1']
    %8 = vsyncpa [#allocation3], 0
    %s9 = scalar_lea.sflag [#allocation3], 1
    %10 = vsyncpa %s9, 0
    loop: start=0, step=1, limit=4
    $region2: #{tpu_custom_call.1} parent=1 // loop_pre_header
      _
    $region3: #{tpu_custom_call.1} parent=1 // loop_header
      %s12 = sphi 0, %s16
      %p13 = scmp.ge.s32.totalorder %s12, 4
      %s19 = sphi 0, %s31
      %s20 = sphi 0, %s27
      %s21 = sphi 0, %s19
      %s22 = sphi 0, %s20
      %s23 = sphi 0, %s21
      %s24 = sphi 0, %s22
      %s36 = sphi 0, %s38
      %s39 = sphi 0, %s36
      %s40 = sphi 0, %s39
      %s56 = sphi 0, %s40
      %s60 = sphi 0, %s60
      %s62 = sphi 0, %s60
      %s63 = sphi 0, %s62
      %s77 = sphi 0, %s63
      %s81 = sphi 0, %s81
      %s83 = sphi 0, %s81
      %s84 = sphi 0, %s83
      %s98 = sphi 0, %s84
      %s106 = sphi 0, %s108
      %s109 = sphi 0, %s106
      %s110 = sphi 0, %s109
      %s126 = sphi 0, %s110
    $region4: #{tpu_custom_call.1} parent=1 // loop_header_branch
      %15 = sbr.rel (%p13) target = $region8
    $region5: #{tpu_custom_call.1} parent=1 // loop_body
      %s17 = ssub.s32 %s12, 1
      %s18 = ssub.s32 %s12, 2
      %s25 = sadd.s32 1, %s20
      %p26 = scmp.ge.s32.totalorder %s25, 1
      %s27 = scalar_select %p26, 0, %s25
      %s28 = sadd.s32 1, %s19
      %s29 = scalar_select %p26, %s28, %s19
      %p30 = scmp.ge.s32.totalorder %s29, 2
      %s31 = scalar_select %p30, 0, %s29
      %s32 = ssub.s32 %s19, %s31
      %s33 = ssub.s32 %s20, %s27
      %s34 = sor.u32 %s32, %s33
      %p35 = scmp.eq.s32.totalorder %s34, 0
      %s37 = sadd.s32 %s36, 1
      %s38 = scalar_select %p35, %s36, %s37
      %p41 = pneg %p35
      %p42 = scmp.eq.s32.totalorder %s12, 1
      %p43 = por %p41, %p42
      %p44 = scmp.ne.s32.totalorder %s36, %s39
      %p45 = scmp.eq.s32.totalorder %s12, 0
      %p46 = por %p44, %p45
      %p47 = scmp.ne.s32.totalorder %s36, %s39
      %p48 = scmp.eq.s32.totalorder %s17, 1
      %p49 = por %p47, %p48
      %p50 = scmp.ne.s32.totalorder %s39, %s40
      %p51 = scmp.eq.s32.totalorder %s17, 0
      %p52 = por %p50, %p51
      %p53 = scmp.ne.s32.totalorder %s39, %s40
      %p54 = scmp.eq.s32.totalorder %s18, 1
      %p55 = por %p53, %p54
      %p57 = scmp.ne.s32.totalorder %s40, %s56
      %p58 = scmp.eq.s32.totalorder %s18, 0
      %p59 = por %p57, %p58
      %s61 = sadd.s32 %s60, 1
      %p64 = scmp.eq.s32.totalorder %s12, 1
      %p65 = scmp.ne.s32.totalorder %s60, %s62
      %p66 = scmp.eq.s32.totalorder %s12, 0
      %p67 = por %p65, %p66
      %p68 = scmp.ne.s32.totalorder %s60, %s62
      %p69 = scmp.eq.s32.totalorder %s17, 1
      %p70 = por %p68, %p69
      %p71 = scmp.ne.s32.totalorder %s62, %s63
      %p72 = scmp.eq.s32.totalorder %s17, 0
      %p73 = por %p71, %p72
      %p74 = scmp.ne.s32.totalorder %s62, %s63
      %p75 = scmp.eq.s32.totalorder %s18, 1
      %p76 = por %p74, %p75
      %p78 = scmp.ne.s32.totalorder %s63, %s77
      %p79 = scmp.eq.s32.totalorder %s18, 0
      %p80 = por %p78, %p79
      %s82 = sadd.s32 %s81, 1
      %p85 = scmp.eq.s32.totalorder %s12, 1
      %p86 = scmp.ne.s32.totalorder %s81, %s83
      %p87 = scmp.eq.s32.totalorder %s12, 0
      %p88 = por %p86, %p87
      %p89 = scmp.ne.s32.totalorder %s81, %s83
      %p90 = scmp.eq.s32.totalorder %s17, 1
      %p91 = por %p89, %p90
      %p92 = scmp.ne.s32.totalorder %s83, %s84
      %p93 = scmp.eq.s32.totalorder %s17, 0
      %p94 = por %p92, %p93
      %p95 = scmp.ne.s32.totalorder %s83, %s84
      %p96 = scmp.eq.s32.totalorder %s18, 1
      %p97 = por %p95, %p96
      %p99 = scmp.ne.s32.totalorder %s84, %s98
      %p100 = scmp.eq.s32.totalorder %s18, 0
      %p101 = por %p99, %p100
      %s102 = ssub.s32 %s19, %s31
      %s103 = ssub.s32 %s20, %s27
      %s104 = sor.u32 %s102, %s103
      %p105 = scmp.eq.s32.totalorder %s104, 0
      %s107 = sadd.s32 %s106, 1
      %s108 = scalar_select %p105, %s106, %s107
      %p111 = pneg %p105
      %p112 = scmp.eq.s32.totalorder %s12, 1
      %p113 = por %p111, %p112
      %p114 = scmp.ne.s32.totalorder %s106, %s109
      %p115 = scmp.eq.s32.totalorder %s12, 0
      %p116 = por %p114, %p115
      %p117 = scmp.ne.s32.totalorder %s106, %s109
      %p118 = scmp.eq.s32.totalorder %s17, 1
      %p119 = por %p117, %p118
      %p120 = scmp.ne.s32.totalorder %s109, %s110
      %p121 = scmp.eq.s32.totalorder %s17, 0
      %p122 = por %p120, %p121
      %p123 = scmp.ne.s32.totalorder %s109, %s110
      %p124 = scmp.eq.s32.totalorder %s18, 1
      %p125 = por %p123, %p124
      %p127 = scmp.ne.s32.totalorder %s110, %s126
      %p128 = scmp.eq.s32.totalorder %s18, 0
      %p129 = por %p127, %p128
      %p130 = scmp.le.s32.totalorder 1, %s12
      %p131 = scmp.lt.s32.totalorder %s12, 3
      %p132 = pnand %p130, %p131
      %p133 = pneg %p132
      // Predicated region
      $region9: #{tpu_custom_call.1} parent=5 // pred_check
        _
      $region10: #{tpu_custom_call.1} parent=5 // pred_check_branch
        %135 = sbr.rel (%p132) target = $region12
      $region11: #{tpu_custom_call.1} parent=5 // pred_region
        %s136 = ssub.s32 %s12, 1
        // Predicated region
        $region13: #{tpu_custom_call.1} parent=11 // pred_check
          %p137 = pneg %p73
        $region14: #{tpu_custom_call.1} parent=11 // pred_check_branch
          %139 = sbr.rel (%p137) target = $region16
        $region15: #{tpu_custom_call.1} parent=11 // pred_region
          _
        $region16: #{tpu_custom_call.1} parent=11 // pred_fallthru
          _
        // Predicated region
        $region17: #{tpu_custom_call.1} parent=11 // pred_check
          %p140 = pneg %p94
        $region18: #{tpu_custom_call.1} parent=11 // pred_check_branch
          %142 = sbr.rel (%p140) target = $region20
        $region19: #{tpu_custom_call.1} parent=11 // pred_region
          _
        $region20: #{tpu_custom_call.1} parent=11 // pred_fallthru
          _
      $region12: #{tpu_custom_call.1} parent=5 // pred_fallthru
        _
      %p143 = scmp.lt.s32.totalorder %s12, 2
      // Predicated region
      $region21: #{tpu_custom_call.1} parent=5 // pred_check
        %p144 = pneg %p143
      $region22: #{tpu_custom_call.1} parent=5 // pred_check_branch
        %146 = sbr.rel (%p144) target = $region24
      $region23: #{tpu_custom_call.1} parent=5 // pred_region
        // Predicated region
        $region25: #{tpu_custom_call.1} parent=23 // pred_check
          %p147 = pneg %p46
        $region26: #{tpu_custom_call.1} parent=23 // pred_check_branch
          %149 = sbr.rel (%p147) target = $region28
        $region27: #{tpu_custom_call.1} parent=23 // pred_region
          %p150 = scmp.lt.s32.totalorder %s19, 1
          %s151 = scalar_select %p150, %s19, 1
          %p152 = scmp.lt.s32.totalorder %s20, 0
          %s153 = scalar_select %p152, %s20, 0
          %s154 = smul.addr %s151, 2
          %s155 = sadd.s32 %s153, %s154
          %s156 = smul.addr %s155, 8
          %s157 = scalar_lea.vmem %s0, %s156
        $region28: #{tpu_custom_call.1} parent=23 // pred_fallthru
          _
      $region24: #{tpu_custom_call.1} parent=5 // pred_fallthru
        _
      %p158 = scmp.le.s32.totalorder 1, %s12
      %p159 = scmp.lt.s32.totalorder %s12, 3
      %p160 = pnand %p158, %p159
      %p161 = pneg %p160
      // Predicated region
      $region29: #{tpu_custom_call.1} parent=5 // pred_check
        _
      $region30: #{tpu_custom_call.1} parent=5 // pred_check_branch
        %163 = sbr.rel (%p160) target = $region32
      $region31: #{tpu_custom_call.1} parent=5 // pred_region
        %s164 = ssub.s32 %s12, 1
        %p165 = scmp.lt.s32.totalorder %s21, 1
        %s166 = scalar_select %p165, %s21, 1
        %p167 = scmp.lt.s32.totalorder %s22, 0
        %s168 = scalar_select %p167, %s22, 0
        %s169 = smul.addr %s166, 2
        %s170 = sadd.s32 %s168, %s169
        %s171 = smul.addr %s170, 8
        %s172 = scalar_lea.vmem %s0, %s171
        %p173 = pneg %p52
        %p174 = pneg %p49
        %p175 = pneg %p73
        %p176 = pneg %p70
        %p177 = pneg %p94
        %p178 = pneg %p91
        %p179 = pneg %p122
        %p180 = pneg %p119
        %s181 = sand.u32 %s109, 1
        %s182 = scalar_lea.sflag [#allocation3], %s181
        %s183 = sand.u32 %s109, 1
        %s184 = smul.addr %s183, 16
        %s185 = scalar_lea.vmem [#allocation2], %s184
        %p186 = scmp.lt.s32.totalorder %s21, 1
        %s187 = scalar_select %p186, %s21, 1
        %p188 = scmp.lt.s32.totalorder %s22, 0
        %s189 = scalar_select %p188, %s22, 0
        %s190 = smul.addr %s187, 2
        %s191 = sadd.s32 %s189, %s190
        %s192 = smul.addr %s191, 8
        %s193 = scalar_lea.vmem %s0, %s192
        %v194 = vld [vmem:[%s193] sm:$0xff]
        %v195 = vld [vmem:[%s193 + $0x8] sm:$0xff]
        %v196 = vld [vmem:[%s1] sm:$0xff]
        %v197 = vld [vmem:[%s1 + $0x8] sm:$0xff]
        %199 = vset.pattern.permute.xlu0 0
        %200 = vperm.xlu0 %199, %v196
        %v201 = vpop.permute.xlu0 %200
        %204 = vset.pattern.permute.xlu0 0
        %205 = vperm.xlu0 %204, %v197
        %v206 = vpop.permute.xlu0 %205
        %v208 = vmul.f32 %v194, %v201
        %v209 = vmul.f32 %v195, %v206
        %v210 = vld [vmem:[%s2] sm:$0xff]
        %v211 = vld [vmem:[%s2 + $0x8] sm:$0xff]
        %213 = vset.pattern.permute.xlu0 0
        %214 = vperm.xlu0 %213, %v210
        %v215 = vpop.permute.xlu0 %214
        %218 = vset.pattern.permute.xlu0 0
        %219 = vperm.xlu0 %218, %v211
        %v220 = vpop.permute.xlu0 %219
        %v222 = vadd.f32 %v208, %v215
        %v223 = vadd.f32 %v209, %v220
        %vm224 = vcmask 261120
        %225 = vst.msk [vmem:[%s185] sm:$0xff] %vm224, %v222
        %226 = vst.msk [vmem:[%s185 + $0x8] sm:$0xff] %vm224, %v223
        %s227 = sand.u32 %s109, 1
        %s228 = scalar_lea.sflag [#allocation3], %s227
        %s229 = sand.u32 %s109, 1
        %s230 = smul.addr %s229, 16
        %s231 = scalar_lea.vmem [#allocation2], %s230
        // Predicated region
        $region33: #{tpu_custom_call.1} parent=31 // pred_check
          %p232 = pneg %p119
        $region34: #{tpu_custom_call.1} parent=31 // pred_check_branch
          %234 = sbr.rel (%p232) target = $region36
        $region35: #{tpu_custom_call.1} parent=31 // pred_region
          %s236 = ssub.s32 256, 256
          %237 = vsyncadd %s228, %s236
          %s238 = smul.addr %s21, 2
          %s239 = sadd.s32 %s22, %s238
          %s240 = smul.addr %s239, 128
          %s241 = scalar_lea.hbm %s3, %s240
          %s242 = sshll.u32 %s231, 4
          %s243 = int_to_ptr.vmem [resolvable:$true] %s242
          %248 = dma.vmem_to_hbm [thread:$0]  %s243, 256, %s241, %s228, 128, 128, 8
        $region36: #{tpu_custom_call.1} parent=31 // pred_fallthru
          _
      $region32: #{tpu_custom_call.1} parent=5 // pred_fallthru
        _
      %p249 = scmp.le.s32.totalorder 2, %s12
      // Predicated region
      $region37: #{tpu_custom_call.1} parent=5 // pred_check
        %p250 = pneg %p249
      $region38: #{tpu_custom_call.1} parent=5 // pred_check_branch
        %252 = sbr.rel (%p250) target = $region40
      $region39: #{tpu_custom_call.1} parent=5 // pred_region
        %s253 = ssub.s32 %s12, 2
        // Predicated region
        $region41: #{tpu_custom_call.1} parent=39 // pred_check
          %p254 = pneg %p125
        $region42: #{tpu_custom_call.1} parent=39 // pred_check_branch
          %256 = sbr.rel (%p254) target = $region44
        $region43: #{tpu_custom_call.1} parent=39 // pred_region
          %s257 = sand.u32 %s110, 1
          %s258 = scalar_lea.sflag [#allocation3], %s257
          %s259 = sand.u32 %s110, 1
          %s260 = smul.addr %s259, 16
          %s261 = scalar_lea.vmem [#allocation2], %s260
          %262 = dma.done %s258, 256
        $region44: #{tpu_custom_call.1} parent=39 // pred_fallthru
          _
      $region40: #{tpu_custom_call.1} parent=5 // pred_fallthru
        _
    $region6: #{tpu_custom_call.1} parent=1 // loop_footer
      %s16 = sadd.s32 1, %s12
    $region7: #{tpu_custom_call.1} parent=1 // loop_footer_branch
      %11 = sbr.rel target = $region3
    $region8: #{tpu_custom_call.1} parent=1 // loop_exit
      _
    %263 = vsyncpa [#allocation3], 1
    %s264 = scalar_lea.sflag [#allocation3], 1
    %265 = vsyncpa %s264, 1

</llo_original>
